<compile_context>
chip_gen: v6e
topology: v6e:2x2x1
jax: 0.10.0
libtpu: 0.0.40
codegen_flags: <defaults>
</compile_context>

<pallas_src>
import functools

import jax
import jax.numpy as jnp
from jax.experimental import pallas as pl
from jax.experimental.pallas import tpu as pltpu


# ----------------------------------------------------------------------------
# small helpers
# ----------------------------------------------------------------------------
def _round_up(x, m):
    return (x + m - 1) // m * m


def _padded_bytes(shape, dtype):
    s = list(shape)
    if len(s) >= 2:
        s[-1] = _round_up(s[-1], 128)
        s[-2] = _round_up(s[-2], 8)
    elif len(s) == 1:
        s[-1] = _round_up(s[-1], 128)
    n = 1
    for d in s:
        n *= d
    return n * jnp.dtype(dtype).itemsize


def _vmem_cap_bytes():
    try:
        return int(pltpu.get_tpu_info().vmem_capacity_bytes)
    except Exception:
        return 64 << 20          # conservative default (v7x per-core VMEM)


def _vmem_limit(entries):
    """entries: iterable of (shape, dtype, buffer_count).
    Budget = padded footprint (I/O blocks x buffer count + in-kernel
    intermediates) + headroom, clamped generation-aware to ~80% of physical
    VMEM (~102 MiB on v5e/v6e, ~51 MiB on v7x)."""
    total = sum(c * _padded_bytes(s, d) for s, d, c in entries)
    cap = _vmem_cap_bytes()
    return int(min(max(total + (6 << 20), 32 << 20), int(cap * 0.8)))


def _const_spec(shape, single_buffer):
    """BlockSpec for a grid-invariant (weight) input. single_buffer=True
    requests pipeline_mode=pl.Buffered(1) so constant blocks are not
    double-buffered (saves VMEM, critical on v7x's 64 MiB)."""
    n = len(shape)
    index_map = lambda *_: (0,) * n
    if single_buffer:
        return pl.BlockSpec(shape, index_map, pipeline_mode=pl.Buffered(1))
    return pl.BlockSpec(shape, index_map)


# ----------------------------------------------------------------------------
# Kernel 1: patch-embedding matmul  (Conv2d stride=kernel == unfold + matmul)
# ----------------------------------------------------------------------------
def _patch_embed_kernel(x_ref, w_ref, b_ref, o_ref):
    acc = jnp.dot(x_ref[...], w_ref[...], preferred_element_type=jnp.float32)
    o_ref[...] = (acc + b_ref[...]).astype(o_ref.dtype)


def patch_embed_matmul(x, w, b, *, tm=512):
    """x: (N, K) patches, w: (K, D), b: (1, D)  ->  (N, D) bf16."""
    N, K = x.shape
    D = w.shape[1]
    tm = min(tm, _round_up(N, 8))
    grid = (pl.cdiv(N, tm),)
    x_bf = x.astype(jnp.bfloat16)
    w_bf = w.astype(jnp.bfloat16)

    def build(single_buffer):
        wcount = 1 if single_buffer else 2
        vmem = _vmem_limit([
            ((tm, K), jnp.bfloat16, 2),        # x block (double-buffered)
            ((K, D), jnp.bfloat16, wcount),    # weight
            ((1, D), jnp.float32, wcount),     # bias
            ((tm, D), jnp.float32, 1),         # fp32 accumulator
            ((tm, D), jnp.bfloat16, 2),        # out block
        ])
        return pl.pallas_call(
            _patch_embed_kernel,
            out_shape=jax.ShapeDtypeStruct((N, D), jnp.bfloat16),
            grid=grid,
            in_specs=[
                pl.BlockSpec((tm, K), lambda i: (i, 0)),
                _const_spec((K, D), single_buffer),
                _const_spec((1, D), single_buffer),
            ],
            out_specs=pl.BlockSpec((tm, D), lambda i: (i, 0)),
            compiler_params=pltpu.CompilerParams(
                dimension_semantics=("parallel",),
                vmem_limit_bytes=vmem,
            ),
        )

    try:
        return build(True)(x_bf, w_bf, b)
    except Exception:   # pl.Buffered(1) not supported on this jax/libtpu combo
        return build(False)(x_bf, w_bf, b)


# ----------------------------------------------------------------------------
# Kernel 2: one transformer encoder layer (per batch element on the grid)
# ----------------------------------------------------------------------------
def _encoder_layer_kernel(
    h_ref,
    wqkv_ref, bqkv_ref, wo_ref, bo_ref,
    g1_ref, be1_ref, w1_ref, bf1_ref, w2_ref, bf2_ref, g2_ref, be2_ref,
    o_ref, *, num_heads, head_dim,
):
    x_bf = h_ref[0]                              # (S, D) bf16
    S, D = x_bf.shape
    x = x_bf.astype(jnp.float32)                 # fp32 copy for residuals / LN

    def layer_norm(v, g_r, b_r):
        mu = jnp.mean(v, axis=-1, keepdims=True)
        var = jnp.mean((v - mu) ** 2, axis=-1, keepdims=True)
        return (v - mu) * jax.lax.rsqrt(var + 1e-5) * g_r[...] + b_r[...]

    # --- fused QKV projection: ONE lane-dense (S, D) x (D, 3D) MXU matmul ----
    # (1/sqrt(head_dim) is folded into wq / bq at weight-prep time.)
    qkv = jnp.dot(x_bf, wqkv_ref[...],
                  preferred_element_type=jnp.float32) + bqkv_ref[...]    # (S, 3D)

    # --- multi-head attention (attention_mask=None => additive mask is zero) -
    # Per-head 2D matmuls: same MXU work as a head-batched dot_general but a
    # much smaller live set (one SxS score matrix at a time) -> VMEM friendly.
    # TODO(synk): on v6e/v7x with head_dim=64, packing pairs of heads (128
    # lanes) would raise MXU occupancy of the score/PV matmuls if profiling
    # shows they are the binding slot.
    # TODO(synk): re-introduce a key-wise additive mask here if a real padded
    # attention mask is ever supplied.
    head_outs = []
    for h in range(num_heads):
        lo = h * head_dim
        qh = qkv[:, lo:lo + head_dim].astype(jnp.bfloat16)                # (S, hd)
        kh = qkv[:, D + lo:D + lo + head_dim].astype(jnp.bfloat16)        # (S, hd)
        vh = qkv[:, 2 * D + lo:2 * D + lo + head_dim].astype(jnp.bfloat16)
        s = jax.lax.dot_general(qh, kh, (((1,), (1,)), ((), ())),
                                preferred_element_type=jnp.float32)       # (S, S)
        s = s - jnp.max(s, axis=-1, keepdims=True)
        p = jnp.exp(s)
        p = p * pl.reciprocal(jnp.sum(p, axis=-1, keepdims=True), approx=True)
        head_outs.append(
            jnp.dot(p.astype(jnp.bfloat16), vh,
                    preferred_element_type=jnp.float32).astype(jnp.bfloat16))

    # --- output projection: concat heads, ONE (S, D) x (D, D) MXU matmul -----
    o_cat = jnp.concatenate(head_outs, axis=-1)                           # (S, D) bf16
    attn = jnp.dot(o_cat, wo_ref[...],
                   preferred_element_type=jnp.float32) + bo_ref[...]      # (S, D)

    # attention residual + LN (standard post-LN self-output)
    x1 = layer_norm(attn + x, g1_ref, be1_ref)

    # --- feed forward ---------------------------------------------------------
    # TODO(synk): FeedForward source not provided; tanh-approx GELU is used
    # (PyTorch nn.GELU default is exact erf) and, matching the literal call
    # `feed_forward(out, hidden_state)`, the residual adds the pre-attention
    # hidden_state.
    f = jnp.dot(x1.astype(jnp.bfloat16), w1_ref[...],
                preferred_element_type=jnp.float32) + bf1_ref[...]
    f = jax.nn.gelu(f)
    f = jnp.dot(f.astype(jnp.bfloat16), w2_ref[...],
                preferred_element_type=jnp.float32) + bf2_ref[...]
    out = layer_norm(f + x, g2_ref, be2_ref)

    o_ref[0] = out.astype(o_ref.dtype)


def _prep_layer_params(lp, num_heads):
    """One-time plain-JAX re-layout: fold 1/sqrt(head_dim) into wq/bq and fuse
    Q/K/V into a single lane-dense (D, 3D) bf16 weight; keep wo as plain (D,D)."""
    D = lp["wq"].shape[0]
    hd = D // num_heads
    scale = 1.0 / (hd ** 0.5)
    return {
        "wqkv": jnp.concatenate([lp["wq"] * scale, lp["wk"], lp["wv"]],
                                axis=1).astype(jnp.bfloat16),       # (D, 3D)
        "bqkv": jnp.concatenate([lp["bq"] * scale, lp["bk"], lp["bv"]],
                                axis=1),                            # (1, 3D) f32
        "wo": lp["wo"].astype(jnp.bfloat16), "bo": lp["bo"],
        "g1": lp["g1"], "be1": lp["be1"],
        "w1": lp["w1"].astype(jnp.bfloat16), "bf1": lp["bf1"],
        "w2": lp["w2"].astype(jnp.bfloat16), "bf2": lp["bf2"],
        "g2": lp["g2"], "be2": lp["be2"],
    }


def encoder_layer(hidden, kp, num_heads):
    B, S, D = hidden.shape
    nh = num_heads
    hd = D // nh
    inter_dim = kp["w1"].shape[1]
    kernel = functools.partial(_encoder_layer_kernel, num_heads=nh, head_dim=hd)

    weight_args = [
        kp["wqkv"], kp["bqkv"], kp["wo"], kp["bo"],
        kp["g1"], kp["be1"], kp["w1"], kp["bf1"],
        kp["w2"], kp["bf2"], kp["g2"], kp["be2"],
    ]

    # In-kernel intermediates counted in the VMEM budget (review feedback).
    intermediates = [
        ((S, 3 * D), jnp.float32, 1),          # fused qkv
        ((S, hd), jnp.bfloat16, 6),            # q/k/v head slices in flight
        ((S, S), jnp.float32, 4),              # score / prob matrices in flight
        ((S, D), jnp.bfloat16, 2),             # head outputs + lane concat
        ((S, D), jnp.float32, 3),              # attn, x1, out
        ((S, inter_dim), jnp.float32, 2),      # MLP activations
    ]

    def build(single_buffer):
        wcount = 1 if single_buffer else 2
        vmem = _vmem_limit(
            [((1, S, D), hidden.dtype, 2), ((1, S, D), jnp.bfloat16, 2)]
            + [(a.shape, a.dtype, wcount) for a in weight_args]
            + intermediates)
        in_specs = [pl.BlockSpec((1, S, D), lambda b: (b, 0, 0))] + [
            _const_spec(a.shape, single_buffer) for a in weight_args]
        # TODO(synk): for v7x (64 MiB VMEM) at ViT-L sizes or batch==1, add a
        # second "parallel" grid axis over query-sequence tiles (flash style)
        # so the live set shrinks and both TensorCores get work.
        return pl.pallas_call(
            kernel,
            out_shape=jax.ShapeDtypeStruct((B, S, D), jnp.bfloat16),
            grid=(B,),
            in_specs=in_specs,
            out_specs=pl.BlockSpec((1, S, D), lambda b: (b, 0, 0)),
            compiler_params=pltpu.CompilerParams(
                dimension_semantics=("parallel",),
                vmem_limit_bytes=vmem,
            ),
        )

    try:
        return build(True)(hidden, *weight_args)
    except Exception:   # pl.Buffered(1) not supported: fall back to default 2x buffering
        return build(False)(hidden, *weight_args)


# ----------------------------------------------------------------------------
# Parameter construction (deterministic, synthetic)
# ----------------------------------------------------------------------------
def init_vit_params(key, *, num_channels, patch_size, image_size, hidden_size,
                    intermediate_size, num_layers):
    ph, pw = patch_size
    patch_dim = num_channels * ph * pw
    assert patch_dim == hidden_size, "cls_token concat requires patch_dim == hidden"
    num_patches = (image_size[0] // ph) * (image_size[1] // pw)
    S = num_patches + 1
    std = 0.02

    keys = iter(jax.random.split(key, 8 + num_layers * 8))
    nrm = lambda shape: std * jax.random.normal(next(keys), shape, dtype=jnp.float32)

    params = {
        "patch_size": (ph, pw),
        "conv_w": nrm((hidden_size, num_channels, ph, pw)),   # Conv2d weight (O,I,kh,kw)
        "conv_b": nrm((hidden_size,)),
        "cls_token": jax.random.normal(next(keys), (1, 1, patch_dim), dtype=jnp.float32),
        # TODO(synk): VitAbsoluteEncoding source not provided; learned table assumed.
        "pos_emb": nrm((1, S, hidden_size)),
        "layers": [],
    }
    for _ in range(num_layers):
        lp = {
            "wq": nrm((hidden_size, hidden_size)), "bq": jnp.zeros((1, hidden_size), jnp.float32),
            "wk": nrm((hidden_size, hidden_size)), "bk": jnp.zeros((1, hidden_size), jnp.float32),
            "wv": nrm((hidden_size, hidden_size)), "bv": jnp.zeros((1, hidden_size), jnp.float32),
            "wo": nrm((hidden_size, hidden_size)), "bo": jnp.zeros((1, hidden_size), jnp.float32),
            "g1": jnp.ones((1, hidden_size), jnp.float32), "be1": jnp.zeros((1, hidden_size), jnp.float32),
            "w1": nrm((hidden_size, intermediate_size)), "bf1": jnp.zeros((1, intermediate_size), jnp.float32),
            "w2": nrm((intermediate_size, hidden_size)), "bf2": jnp.zeros((1, hidden_size), jnp.float32),
            "g2": jnp.ones((1, hidden_size), jnp.float32), "be2": jnp.zeros((1, hidden_size), jnp.float32),
        }
        params["layers"].append(lp)
    return params


# ----------------------------------------------------------------------------
# Full Vit forward
# ----------------------------------------------------------------------------
def vit_forward(pixel_values, params, *, num_heads):
    B, C, H, W = pixel_values.shape
    ph, pw = params["patch_size"]
    Hp, Wp = H // ph, W // pw
    P = Hp * Wp
    D = params["conv_w"].shape[0]

    # Conv2d(kernel=stride=patch) == unfold patches (glue) + matmul (Pallas).
    # TODO(synk): on v5e the standalone NCHW->patch transpose costs an extra
    # HBM round trip; it could be folded into the patch-embed pallas_call via a
    # (Hp, Wp) patch-tile BlockSpec index_map.
    x = pixel_values.reshape(B, C, Hp, ph, Wp, pw)
    x = jnp.transpose(x, (0, 2, 4, 1, 3, 5)).reshape(B * P, C * ph * pw)
    w_flat = params["conv_w"].reshape(D, C * ph * pw).T            # (patch_dim, D)
    img_seq = patch_embed_matmul(x, w_flat, params["conv_b"].reshape(1, D))
    hidden = img_seq.reshape(B, P, D)                              # (B, P, D) bf16

    # prepend cls token, add absolute position embedding (bf16 activation carry)
    cls = jnp.broadcast_to(params["cls_token"], (B, 1, D)).astype(jnp.bfloat16)
    hidden = jnp.concatenate([cls, hidden], axis=1)                # (B, S, D)
    hidden = hidden + params["pos_emb"].astype(jnp.bfloat16)

    # attention_mask=None path: ones -> additive mask of zeros -> omitted.
    layer_kps = [_prep_layer_params(lp, num_heads) for lp in params["layers"]]
    for kp in layer_kps:
        hidden = encoder_layer(hidden, kp, num_heads)
    return hidden.astype(jnp.float32)  # EncoderOutput.logits


# ----------------------------------------------------------------------------
if __name__ == "__main__":
    key = jax.random.PRNGKey(0)
    k_param, k_x = jax.random.split(key)

    # small config: image 16x16, 4 channels, 4x4 patches -> patch_dim = 64 = hidden
    B, C, H, W = 2, 4, 16, 16
    patch = (4, 4)
    hidden_size = C * patch[0] * patch[1]       # 64
    intermediate_size = 128
    num_layers = 2
    num_heads = 4

    params = init_vit_params(
        k_param,
        num_channels=C, patch_size=patch, image_size=(H, W),
        hidden_size=hidden_size, intermediate_size=intermediate_size,
        num_layers=num_layers,
    )
    pixel_values = jax.random.normal(k_x, (B, C, H, W), dtype=jnp.float32)

    logits = vit_forward(pixel_values, params, num_heads=num_heads)
    jax.block_until_ready(logits)
    assert logits.shape == (B, (H // patch[0]) * (W // patch[1]) + 1, hidden_size)
    print("KERNEL_OK")
</pallas_src>

<mosaic_0001>
module attributes {stable_mosaic.version = 11 : i64} {
  func.func @_patch_embed_kernel(%arg0: i32, %arg1: memref<32x64xbf16, #tpu.memory_space<vmem>>, %arg2: memref<64x64xbf16, #tpu.memory_space<vmem>>, %arg3: memref<1x64xf32, #tpu.memory_space<vmem>>, %arg4: memref<32x64xbf16, #tpu.memory_space<vmem>>) attributes {dimension_semantics = [#tpu.dimension_semantics<parallel>], iteration_bounds = array<i64: 1>, scalar_prefetch = 0 : i64, scratch_operands = 0 : i64, tpu.core_type = #tpu.core_type<tc>, window_params = [{transform_indices = @transform_0, window_bounds = array<i64: 32, 64>}, {pipeline_mode = #tpu.pipeline_mode<synchronous>, transform_indices = @transform_1, window_bounds = array<i64: 64, 64>}, {pipeline_mode = #tpu.pipeline_mode<synchronous>, transform_indices = @transform_2, window_bounds = array<i64: 1, 64>}, {transform_indices = @transform_3, window_bounds = array<i64: 32, 64>}]} {
    %c0 = arith.constant 0 : index
    %c0_0 = arith.constant 0 : index
    %0 = vector.load %arg1[%c0, %c0_0] : memref<32x64xbf16, #tpu.memory_space<vmem>>, vector<32x64xbf16>
    %c0_1 = arith.constant 0 : index
    %c0_2 = arith.constant 0 : index
    %1 = vector.load %arg2[%c0_1, %c0_2] : memref<64x64xbf16, #tpu.memory_space<vmem>>, vector<64x64xbf16>
    %cst = arith.constant dense<0.000000e+00> : vector<32x64xf32>
    %2 = tpu.matmul %0, %1, %cst {dimension_numbers = #tpu.dot_dimension_numbers<[1], [0], [0], [1], [0, 0, 1, 1], [], []>} : vector<32x64xbf16>, vector<64x64xbf16>, vector<32x64xf32> -> vector<32x64xf32>
    %c0_3 = arith.constant 0 : index
    %c0_4 = arith.constant 0 : index
    %3 = vector.load %arg3[%c0_3, %c0_4] : memref<1x64xf32, #tpu.memory_space<vmem>>, vector<1x64xf32>
    %4 = vector.broadcast %3 : vector<1x64xf32> to vector<32x64xf32>
    %5 = arith.addf %2, %4 : vector<32x64xf32>
    %6 = arith.truncf %5 : vector<32x64xf32> to vector<32x64xbf16>
    %c0_5 = arith.constant 0 : index
    %c0_6 = arith.constant 0 : index
    %7 = vector.load %arg4[%c0_5, %c0_6] : memref<32x64xbf16, #tpu.memory_space<vmem>>, vector<32x64xbf16>
    tpu.vector_store %arg4[%c0_5, %c0_6], %6 {strides = array<i32>} : memref<32x64xbf16, #tpu.memory_space<vmem>>, vector<32x64xbf16>,
    return
  }
  func.func @transform_0(%arg0: i32) -> (i32, i32) {
    %c0_i32 = arith.constant 0 : i32
    %c0_i32_0 = arith.constant 0 : i32
    return %arg0, %c0_i32 : i32, i32
  }
  func.func @transform_1(%arg0: i32) -> (i32, i32) {
    %c0_i32 = arith.constant 0 : i32
    %c0_i32_0 = arith.constant 0 : i32
    %c0_i32_1 = arith.constant 0 : i32
    return %c0_i32, %c0_i32_0 : i32, i32
  }
  func.func @transform_2(%arg0: i32) -> (i32, i32) {
    %c0_i32 = arith.constant 0 : i32
    %c0_i32_0 = arith.constant 0 : i32
    %c0_i32_1 = arith.constant 0 : i32
    return %c0_i32, %c0_i32_0 : i32, i32
  }
  func.func @transform_3(%arg0: i32) -> (i32, i32) {
    %c0_i32 = arith.constant 0 : i32
    %c0_i32_0 = arith.constant 0 : i32
    return %arg0, %c0_i32 : i32, i32
  }
}

module attributes {stable_mosaic.version = 11 : i64} {
  func.func @_patch_embed_kernel(%arg0: i32, %arg1: memref<32x64xbf16, #tpu.memory_space<vmem>>, %arg2: memref<64x64xbf16, #tpu.memory_space<vmem>>, %arg3: memref<1x64xf32, #tpu.memory_space<vmem>>, %arg4: memref<32x64xbf16, #tpu.memory_space<vmem>>) attributes {dimension_semantics = [#tpu.dimension_semantics<parallel>], iteration_bounds = array<i64: 1>, scalar_prefetch = 0 : i64, scratch_operands = 0 : i64, tpu.core_type = #tpu.core_type<tc>, window_params = [{transform_indices = @transform_0, window_bounds = array<i64: 32, 64>}, {pipeline_mode = #tpu.pipeline_mode<synchronous>, transform_indices = @transform_1, window_bounds = array<i64: 64, 64>}, {pipeline_mode = #tpu.pipeline_mode<synchronous>, transform_indices = @transform_2, window_bounds = array<i64: 1, 64>}, {transform_indices = @transform_3, window_bounds = array<i64: 32, 64>}]} {
    %c0 = arith.constant 0 : index
    %c0_0 = arith.constant 0 : index
    %0 = vector.load %arg1[%c0, %c0_0] : memref<32x64xbf16, #tpu.memory_space<vmem>>, vector<32x64xbf16>
    %c0_1 = arith.constant 0 : index
    %c0_2 = arith.constant 0 : index
    %1 = vector.load %arg2[%c0_1, %c0_2] : memref<64x64xbf16, #tpu.memory_space<vmem>>, vector<64x64xbf16>
    %cst = arith.constant dense<0.000000e+00> : vector<32x64xf32>
    %2 = tpu.matmul %0, %1, %cst {dimension_numbers = #tpu.dot_dimension_numbers<[1], [0], [0], [1], [0, 0, 1, 1], [], []>} : vector<32x64xbf16>, vector<64x64xbf16>, vector<32x64xf32> -> vector<32x64xf32>
    %c0_3 = arith.constant 0 : index
    %c0_4 = arith.constant 0 : index
    %3 = vector.load %arg3[%c0_3, %c0_4] : memref<1x64xf32, #tpu.memory_space<vmem>>, vector<1x64xf32>
    %4 = vector.broadcast %3 : vector<1x64xf32> to vector<32x64xf32>
    %5 = arith.addf %2, %4 : vector<32x64xf32>
    %6 = arith.truncf %5 : vector<32x64xf32> to vector<32x64xbf16>
    %c0_5 = arith.constant 0 : index
    %c0_6 = arith.constant 0 : index
    %7 = vector.load %arg4[%c0_5, %c0_6] : memref<32x64xbf16, #tpu.memory_space<vmem>>, vector<32x64xbf16>
    tpu.vector_store %arg4[%c0_5, %c0_6], %6 {strides = array<i32>} : memref<32x64xbf16, #tpu.memory_space<vmem>>, vector<32x64xbf16>,
    return
  }
  func.func @transform_0(%arg0: i32) -> (i32, i32) {
    %c0_i32 = arith.constant 0 : i32
    %c0_i32_0 = arith.constant 0 : i32
    return %arg0, %c0_i32 : i32, i32
  }
  func.func @transform_1(%arg0: i32) -> (i32, i32) {
    %c0_i32 = arith.constant 0 : i32
    %c0_i32_0 = arith.constant 0 : i32
    %c0_i32_1 = arith.constant 0 : i32
    return %c0_i32, %c0_i32_0 : i32, i32
  }
  func.func @transform_2(%arg0: i32) -> (i32, i32) {
    %c0_i32 = arith.constant 0 : i32
    %c0_i32_0 = arith.constant 0 : i32
    %c0_i32_1 = arith.constant 0 : i32
    return %c0_i32, %c0_i32_0 : i32, i32
  }
  func.func @transform_3(%arg0: i32) -> (i32, i32) {
    %c0_i32 = arith.constant 0 : i32
    %c0_i32_0 = arith.constant 0 : i32
    return %arg0, %c0_i32 : i32, i32
  }
}

</mosaic_0001>

<llo_original>
// kernel: tpu_custom_call.1
$region0: #{tpu_custom_call.1}
  #allocation0 [shape = 'u32[]', space=smem, size = 0x4, offset = 0x4, fixed_abs, tag = 'smem constant byte address 0x4 - core index']
  #allocation1 [shape = 'u32[144,128]{1,0:T(1,128)}', space=vmem, size = 0x12000, scoped, tag = 'internal scratch']
  %s0 = inlined_call_operand.hbm [shape: bf16[32,64], index: 0, kind: input, shape index: {}]
  %s1 = inlined_call_operand.hbm [shape: bf16[64,64], index: 1, kind: input, shape index: {}]
  %s2 = inlined_call_operand.vmem [shape: f32[1,64], index: 2, kind: input, shape index: {}]
  %s3 = inlined_call_operand.hbm [shape: bf16[32,64], index: 3, kind: output, shape index: {}]
  %s4 = sld [smem:[#allocation0]]
  $region30: #{tpu_custom_call.1} parent=0
    _
  %s6 = ssub.s32 1, %s4
  %s7 = scalar_select 0, %s6, %s4
  $region1: #{tpu_custom_call.1} parent=0
    #allocation2 [shape = 'u8[8192]{0}', space=vmem, size = 0x2000, scoped, tag = 'input window, operand 0, single buffered']
    #allocation3 [shape = 's32[1]{0}', space=sflag, size = 0x4, scoped, tag = 'scoped memory for tpu_custom_call.1']
    #allocation4 [shape = 's32[1]{0}', space=sflag, size = 0x4, scoped, tag = 'scoped memory for tpu_custom_call.1']
    #allocation5 [shape = 'u8[16384]{0}', space=vmem, size = 0x4000, scoped, tag = 'input window, operand 1, single buffered']
    #allocation6 [shape = 's32[1]{0}', space=sflag, size = 0x4, scoped, tag = 'scoped memory for tpu_custom_call.1']
    #allocation7 [shape = 'u8[8192]{0}', space=vmem, size = 0x2000, scoped, tag = 'output window, operand 0, single buffered']
    %8 = vsyncpa [#allocation3], 0
    %9 = vsyncpa [#allocation6], 0
    %10 = vsyncpa [#allocation4], 0
    // Predicated region
    $region2: #{tpu_custom_call.1} parent=1 // pred_check
      _
    $region3: #{tpu_custom_call.1} parent=1 // pred_check_branch
      %12 = sbr.rel (0) target = $region5
    $region4: #{tpu_custom_call.1} parent=1 // pred_region
      %s14 = ssub.s32 256, 256
      %15 = vsyncadd [#allocation3], %s14
      %s16 = sshll.u32 [#allocation2], 4
      %s17 = int_to_ptr.vmem [resolvable:$true] %s16
      %22 = dma.hbm_to_vmem [thread:$0]  %s0, 256, %s17, [#allocation3], 64, 64, 4
    $region5: #{tpu_custom_call.1} parent=1 // pred_fallthru
      _
    // Predicated region
    $region6: #{tpu_custom_call.1} parent=1 // pred_check
      _
    $region7: #{tpu_custom_call.1} parent=1 // pred_check_branch
      %24 = sbr.rel (0) target = $region9
    $region8: #{tpu_custom_call.1} parent=1 // pred_region
      %s26 = ssub.s32 512, 512
      %27 = vsyncadd [#allocation6], %s26
      %s28 = sshll.u32 [#allocation5], 4
      %s29 = int_to_ptr.vmem [resolvable:$true] %s28
      %34 = dma.hbm_to_vmem [thread:$0]  %s1, 512, %s29, [#allocation6], 64, 64, 4
    $region9: #{tpu_custom_call.1} parent=1 // pred_fallthru
      _
    // Predicated region
    $region10: #{tpu_custom_call.1} parent=1 // pred_check
      _
    $region11: #{tpu_custom_call.1} parent=1 // pred_check_branch
      %36 = sbr.rel (0) target = $region13
    $region12: #{tpu_custom_call.1} parent=1 // pred_region
      _
    $region13: #{tpu_custom_call.1} parent=1 // pred_fallthru
      _
    // Predicated region
    $region14: #{tpu_custom_call.1} parent=1 // pred_check
      _
    $region15: #{tpu_custom_call.1} parent=1 // pred_check_branch
      %38 = sbr.rel (0) target = $region17
    $region16: #{tpu_custom_call.1} parent=1 // pred_region
      %39 = dma.done [#allocation3], 256
    $region17: #{tpu_custom_call.1} parent=1 // pred_fallthru
      _
    // Predicated region
    $region18: #{tpu_custom_call.1} parent=1 // pred_check
      _
    $region19: #{tpu_custom_call.1} parent=1 // pred_check_branch
      %41 = sbr.rel (0) target = $region21
    $region20: #{tpu_custom_call.1} parent=1 // pred_region
      %42 = dma.done [#allocation6], 512
    $region21: #{tpu_custom_call.1} parent=1 // pred_fallthru
      _
    %v44 = vld [vmem:[#allocation2] sm:$0xf]
    %v45 = vld [vmem:[#allocation2 + $0x4] sm:$0xf]
    %v46 = vld [vmem:[#allocation2 + $0x8] sm:$0xf]
    %v47 = vld [vmem:[#allocation2 + $0xc] sm:$0xf]
    %v48 = vld [vmem:[#allocation5] sm:$0xf]
    %v49 = vld [vmem:[#allocation5 + $0x4] sm:$0xf]
    %v50 = vld [vmem:[#allocation5 + $0x8] sm:$0xf]
    %v51 = vld [vmem:[#allocation5 + $0xc] sm:$0xf]
    %v52 = vld [vmem:[#allocation5 + $0x10] sm:$0xf]
    %v53 = vld [vmem:[#allocation5 + $0x14] sm:$0xf]
    %v54 = vld [vmem:[#allocation5 + $0x18] sm:$0xf]
    %v55 = vld [vmem:[#allocation5 + $0x1c] sm:$0xf]
    %v56 = vld [vmem:[%s2] sm:$0x1]
    %v58 = vlaneseq
    %v59 = vshrl.u32 %v58, 7
    %v60 = vsub.s32 0, %v59
    %v61 = vrot.slane %v56, %v60
    %v67 = vunpack.c.l.b16 %v44
    %v68 = vunpack.c.l.b16 %v45
    %v69 = vunpack.c.l.b16 %v46
    %v70 = vunpack.c.l.b16 %v47
    %v71 = vpack.c.b16 %v68, %v67
    %v72 = vpack.c.b16 %v70, %v69
    %v81 = vunpack.c.l.b16 %v48
    %v82 = vunpack.c.l.b16 %v49
    %v83 = vunpack.c.l.b16 %v50
    %v84 = vunpack.c.l.b16 %v51
    %v85 = vunpack.c.l.b16 %v52
    %v86 = vunpack.c.l.b16 %v53
    %v87 = vunpack.c.l.b16 %v54
    %v88 = vunpack.c.l.b16 %v55
    %v89 = vpack.c.b16 %v82, %v81
    %v90 = vpack.c.b16 %v84, %v83
    %v91 = vpack.c.b16 %v86, %v85
    %v92 = vpack.c.b16 %v88, %v87
    %vm97 = vcmask 523264
    %v99 = vsel %vm97, %v71, 0
    %v102 = vsel %vm97, %v72, 0
    %104 = vmatprep.subr.bf16.mxu0 0
    %105 = vmatpush1.bf16.msra.mxu0 0
    %106 = vmatprep.subr.bf16.mxu0 0
    %107 = vmatpush1.bf16.msra.mxu0 0
    %108 = vmatprep.subr.bf16.mxu0 0
    %109 = vmatpush1.bf16.msra.mxu0 0
    %110 = vmatprep.subr.bf16.mxu0 0
    %111 = vmatpush1.bf16.msra.mxu0 0
    %112 = vmatprep.subr.bf16.mxu0 0
    %113 = vmatpush1.bf16.msra.mxu0 %v92
    %114 = vmatprep.subr.bf16.mxu0 0
    %115 = vmatpush1.bf16.msra.mxu0 %v91
    %116 = vmatprep.subr.bf16.mxu0 0
    %117 = vmatpush1.bf16.msra.mxu0 %v90
    %118 = vmatprep.subr.bf16.mxu0 0
    %119 = vmatpush1.bf16.msra.mxu0 %v89
    %120 = vmatprep.subr.bf16.mxu0 0
    %121 = vmatpush2.bf16.msra.mxu0 0
    %122 = vmatprep.subr.bf16.mxu0 0
    %123 = vmatpush2.bf16.msra.mxu0 0
    %124 = vmatprep.subr.bf16.mxu0 0
    %125 = vmatpush2.bf16.msra.mxu0 0
    %126 = vmatprep.subr.bf16.mxu0 0
    %127 = vmatpush2.bf16.msra.mxu0 0
    %128 = vmatprep.subr.bf16.mxu0 0
    %129 = vmatpush2.bf16.msra.mxu0 0
    %130 = vmatprep.subr.bf16.mxu0 0
    %131 = vmatpush2.bf16.msra.mxu0 0
    %132 = vmatprep.subr.bf16.mxu0 0
    %133 = vmatpush2.bf16.msra.mxu0 0
    %134 = vmatprep.subr.bf16.mxu0 0
    %135 = vmatpush2.bf16.msra.mxu0 0
    %136 = vmatprep.mubr.bf16.mxu0 0
    %137 = vmatmul.mubr.bf16.gmra.mxu0 %v99
    %v138 = vpop.f32.mrf.mxu0
    %v139 = vadd.f32 %v61, %v138
    %v140 = vpop.f32.mrf.mxu0
    %v141 = vpop.f32.mrf.mxu0
    %v142 = vadd.f32 %v61, %v141
    %v143 = vpop.f32.mrf.mxu0
    %144 = vmatprep.mubr.bf16.mxu0 0
    %145 = vmatmul.mubr.bf16.gmra.mxu0 %v102
    %v146 = vpop.f32.mrf.mxu0
    %v147 = vadd.f32 %v61, %v146
    %v148 = vpop.f32.mrf.mxu0
    %v149 = vpop.f32.mrf.mxu0
    %v150 = vadd.f32 %v61, %v149
    %v151 = vpop.f32.mrf.mxu0
    %152 = vdwg.mxu0
    %v153 = vpack.c.bf16 %v142, %v139
    %v154 = vpack.c.bf16 %v150, %v147
    %v157 = vunpack.c.l.b16 %v153
    %v158 = vunpack.c.h.b16 %v153
    %v159 = vunpack.c.l.b16 %v154
    %v160 = vunpack.c.h.b16 %v154
    %v161 = vpack.c.b16 %v157, %v157
    %v162 = vpack.c.b16 %v158, %v158
    %v163 = vpack.c.b16 %v159, %v159
    %v164 = vpack.c.b16 %v160, %v160
    %vm169 = vcmask 519168
    %170 = vst.msk [vmem:[#allocation7] sm:$0xf] %vm169, %v161
    %171 = vst.msk [vmem:[#allocation7 + $0x4] sm:$0xf] %vm169, %v162
    %172 = vst.msk [vmem:[#allocation7 + $0x8] sm:$0xf] %vm169, %v163
    %173 = vst.msk [vmem:[#allocation7 + $0xc] sm:$0xf] %vm169, %v164
    // Predicated region
    $region22: #{tpu_custom_call.1} parent=1 // pred_check
      _
    $region23: #{tpu_custom_call.1} parent=1 // pred_check_branch
      %175 = sbr.rel (0) target = $region25
    $region24: #{tpu_custom_call.1} parent=1 // pred_region
      %s177 = ssub.s32 256, 256
      %178 = vsyncadd [#allocation4], %s177
      %s179 = sshll.u32 [#allocation7], 4
      %s180 = int_to_ptr.vmem [resolvable:$true] %s179
      %185 = dma.vmem_to_hbm [thread:$0]  %s180, 256, %s3, [#allocation4], 64, 64, 4
    $region25: #{tpu_custom_call.1} parent=1 // pred_fallthru
      _
    // Predicated region
    $region26: #{tpu_custom_call.1} parent=1 // pred_check
      _
    $region27: #{tpu_custom_call.1} parent=1 // pred_check_branch
      %187 = sbr.rel (0) target = $region29
    $region28: #{tpu_custom_call.1} parent=1 // pred_region
      %188 = dma.done [#allocation4], 256
    $region29: #{tpu_custom_call.1} parent=1 // pred_fallthru
      _
    %189 = vsyncpa [#allocation3], 1
    %190 = vsyncpa [#allocation6], 1
    %191 = vsyncpa [#allocation4], 1

// kernel: tpu_custom_call.1
$region0: #{tpu_custom_call.1}
  #allocation0 [shape = 'u32[]', space=smem, size = 0x4, offset = 0x4, fixed_abs, tag = 'smem constant byte address 0x4 - core index']
  #allocation1 [shape = 'u32[144,128]{1,0:T(1,128)}', space=vmem, size = 0x12000, scoped, tag = 'internal scratch']
  %s0 = inlined_call_operand.hbm [shape: bf16[32,64], index: 0, kind: input, shape index: {}]
  %s1 = inlined_call_operand.hbm [shape: bf16[64,64], index: 1, kind: input, shape index: {}]
  %s2 = inlined_call_operand.vmem [shape: f32[1,64], index: 2, kind: input, shape index: {}]
  %s3 = inlined_call_operand.hbm [shape: bf16[32,64], index: 3, kind: output, shape index: {}]
  %s4 = sld [smem:[#allocation0]]
  $region30: #{tpu_custom_call.1} parent=0
    _
  %s6 = ssub.s32 1, %s4
  %s7 = scalar_select 0, %s6, %s4
  $region1: #{tpu_custom_call.1} parent=0
    #allocation2 [shape = 'u8[8192]{0}', space=vmem, size = 0x2000, scoped, tag = 'input window, operand 0, single buffered']
    #allocation3 [shape = 's32[1]{0}', space=sflag, size = 0x4, scoped, tag = 'scoped memory for tpu_custom_call.1']
    #allocation4 [shape = 's32[1]{0}', space=sflag, size = 0x4, scoped, tag = 'scoped memory for tpu_custom_call.1']
    #allocation5 [shape = 'u8[16384]{0}', space=vmem, size = 0x4000, scoped, tag = 'input window, operand 1, single buffered']
    #allocation6 [shape = 's32[1]{0}', space=sflag, size = 0x4, scoped, tag = 'scoped memory for tpu_custom_call.1']
    #allocation7 [shape = 'u8[8192]{0}', space=vmem, size = 0x2000, scoped, tag = 'output window, operand 0, single buffered']
    %8 = vsyncpa [#allocation3], 0
    %9 = vsyncpa [#allocation6], 0
    %10 = vsyncpa [#allocation4], 0
    // Predicated region
    $region2: #{tpu_custom_call.1} parent=1 // pred_check
      _
    $region3: #{tpu_custom_call.1} parent=1 // pred_check_branch
      %12 = sbr.rel (0) target = $region5
    $region4: #{tpu_custom_call.1} parent=1 // pred_region
      %s14 = ssub.s32 256, 256
      %15 = vsyncadd [#allocation3], %s14
      %s16 = sshll.u32 [#allocation2], 4
      %s17 = int_to_ptr.vmem [resolvable:$true] %s16
      %22 = dma.hbm_to_vmem [thread:$0]  %s0, 256, %s17, [#allocation3], 64, 64, 4
    $region5: #{tpu_custom_call.1} parent=1 // pred_fallthru
      _
    // Predicated region
    $region6: #{tpu_custom_call.1} parent=1 // pred_check
      _
    $region7: #{tpu_custom_call.1} parent=1 // pred_check_branch
      %24 = sbr.rel (0) target = $region9
    $region8: #{tpu_custom_call.1} parent=1 // pred_region
      %s26 = ssub.s32 512, 512
      %27 = vsyncadd [#allocation6], %s26
      %s28 = sshll.u32 [#allocation5], 4
      %s29 = int_to_ptr.vmem [resolvable:$true] %s28
      %34 = dma.hbm_to_vmem [thread:$0]  %s1, 512, %s29, [#allocation6], 64, 64, 4
    $region9: #{tpu_custom_call.1} parent=1 // pred_fallthru
      _
    // Predicated region
    $region10: #{tpu_custom_call.1} parent=1 // pred_check
      _
    $region11: #{tpu_custom_call.1} parent=1 // pred_check_branch
      %36 = sbr.rel (0) target = $region13
    $region12: #{tpu_custom_call.1} parent=1 // pred_region
      _
    $region13: #{tpu_custom_call.1} parent=1 // pred_fallthru
      _
    // Predicated region
    $region14: #{tpu_custom_call.1} parent=1 // pred_check
      _
    $region15: #{tpu_custom_call.1} parent=1 // pred_check_branch
      %38 = sbr.rel (0) target = $region17
    $region16: #{tpu_custom_call.1} parent=1 // pred_region
      %39 = dma.done [#allocation3], 256
    $region17: #{tpu_custom_call.1} parent=1 // pred_fallthru
      _
    // Predicated region
    $region18: #{tpu_custom_call.1} parent=1 // pred_check
      _
    $region19: #{tpu_custom_call.1} parent=1 // pred_check_branch
      %41 = sbr.rel (0) target = $region21
    $region20: #{tpu_custom_call.1} parent=1 // pred_region
      %42 = dma.done [#allocation6], 512
    $region21: #{tpu_custom_call.1} parent=1 // pred_fallthru
      _
    %v44 = vld [vmem:[#allocation2] sm:$0xf]
    %v45 = vld [vmem:[#allocation2 + $0x4] sm:$0xf]
    %v46 = vld [vmem:[#allocation2 + $0x8] sm:$0xf]
    %v47 = vld [vmem:[#allocation2 + $0xc] sm:$0xf]
    %v48 = vld [vmem:[#allocation5] sm:$0xf]
    %v49 = vld [vmem:[#allocation5 + $0x4] sm:$0xf]
    %v50 = vld [vmem:[#allocation5 + $0x8] sm:$0xf]
    %v51 = vld [vmem:[#allocation5 + $0xc] sm:$0xf]
    %v52 = vld [vmem:[#allocation5 + $0x10] sm:$0xf]
    %v53 = vld [vmem:[#allocation5 + $0x14] sm:$0xf]
    %v54 = vld [vmem:[#allocation5 + $0x18] sm:$0xf]
    %v55 = vld [vmem:[#allocation5 + $0x1c] sm:$0xf]
    %v56 = vld [vmem:[%s2] sm:$0x1]
    %v58 = vlaneseq
    %v59 = vshrl.u32 %v58, 7
    %v60 = vsub.s32 0, %v59
    %v61 = vrot.slane %v56, %v60
    %v67 = vunpack.c.l.b16 %v44
    %v68 = vunpack.c.l.b16 %v45
    %v69 = vunpack.c.l.b16 %v46
    %v70 = vunpack.c.l.b16 %v47
    %v71 = vpack.c.b16 %v68, %v67
    %v72 = vpack.c.b16 %v70, %v69
    %v81 = vunpack.c.l.b16 %v48
    %v82 = vunpack.c.l.b16 %v49
    %v83 = vunpack.c.l.b16 %v50
    %v84 = vunpack.c.l.b16 %v51
    %v85 = vunpack.c.l.b16 %v52
    %v86 = vunpack.c.l.b16 %v53
    %v87 = vunpack.c.l.b16 %v54
    %v88 = vunpack.c.l.b16 %v55
    %v89 = vpack.c.b16 %v82, %v81
    %v90 = vpack.c.b16 %v84, %v83
    %v91 = vpack.c.b16 %v86, %v85
    %v92 = vpack.c.b16 %v88, %v87
    %vm97 = vcmask 523264
    %v99 = vsel %vm97, %v71, 0
    %v102 = vsel %vm97, %v72, 0
    %104 = vmatprep.subr.bf16.mxu0 0
    %105 = vmatpush1.bf16.msra.mxu0 0
    %106 = vmatprep.subr.bf16.mxu0 0
    %107 = vmatpush1.bf16.msra.mxu0 0
    %108 = vmatprep.subr.bf16.mxu0 0
    %109 = vmatpush1.bf16.msra.mxu0 0
    %110 = vmatprep.subr.bf16.mxu0 0
    %111 = vmatpush1.bf16.msra.mxu0 0
    %112 = vmatprep.subr.bf16.mxu0 0
    %113 = vmatpush1.bf16.msra.mxu0 %v92
    %114 = vmatprep.subr.bf16.mxu0 0
    %115 = vmatpush1.bf16.msra.mxu0 %v91
    %116 = vmatprep.subr.bf16.mxu0 0
    %117 = vmatpush1.bf16.msra.mxu0 %v90
    %118 = vmatprep.subr.bf16.mxu0 0
    %119 = vmatpush1.bf16.msra.mxu0 %v89
    %120 = vmatprep.subr.bf16.mxu0 0
    %121 = vmatpush2.bf16.msra.mxu0 0
    %122 = vmatprep.subr.bf16.mxu0 0
    %123 = vmatpush2.bf16.msra.mxu0 0
    %124 = vmatprep.subr.bf16.mxu0 0
    %125 = vmatpush2.bf16.msra.mxu0 0
    %126 = vmatprep.subr.bf16.mxu0 0
    %127 = vmatpush2.bf16.msra.mxu0 0
    %128 = vmatprep.subr.bf16.mxu0 0
    %129 = vmatpush2.bf16.msra.mxu0 0
    %130 = vmatprep.subr.bf16.mxu0 0
    %131 = vmatpush2.bf16.msra.mxu0 0
    %132 = vmatprep.subr.bf16.mxu0 0
    %133 = vmatpush2.bf16.msra.mxu0 0
    %134 = vmatprep.subr.bf16.mxu0 0
    %135 = vmatpush2.bf16.msra.mxu0 0
    %136 = vmatprep.mubr.bf16.mxu0 0
    %137 = vmatmul.mubr.bf16.gmra.mxu0 %v99
    %v138 = vpop.f32.mrf.mxu0
    %v139 = vadd.f32 %v61, %v138
    %v140 = vpop.f32.mrf.mxu0
    %v141 = vpop.f32.mrf.mxu0
    %v142 = vadd.f32 %v61, %v141
    %v143 = vpop.f32.mrf.mxu0
    %144 = vmatprep.mubr.bf16.mxu0 0
    %145 = vmatmul.mubr.bf16.gmra.mxu0 %v102
    %v146 = vpop.f32.mrf.mxu0
    %v147 = vadd.f32 %v61, %v146
    %v148 = vpop.f32.mrf.mxu0
    %v149 = vpop.f32.mrf.mxu0
    %v150 = vadd.f32 %v61, %v149
    %v151 = vpop.f32.mrf.mxu0
    %152 = vdwg.mxu0
    %v153 = vpack.c.bf16 %v142, %v139
    %v154 = vpack.c.bf16 %v150, %v147
    %v157 = vunpack.c.l.b16 %v153
    %v158 = vunpack.c.h.b16 %v153
    %v159 = vunpack.c.l.b16 %v154
    %v160 = vunpack.c.h.b16 %v154
    %v161 = vpack.c.b16 %v157, %v157
    %v162 = vpack.c.b16 %v158, %v158
    %v163 = vpack.c.b16 %v159, %v159
    %v164 = vpack.c.b16 %v160, %v160
    %vm169 = vcmask 519168
    %170 = vst.msk [vmem:[#allocation7] sm:$0xf] %vm169, %v161
    %171 = vst.msk [vmem:[#allocation7 + $0x4] sm:$0xf] %vm169, %v162
    %172 = vst.msk [vmem:[#allocation7 + $0x8] sm:$0xf] %vm169, %v163
    %173 = vst.msk [vmem:[#allocation7 + $0xc] sm:$0xf] %vm169, %v164
    // Predicated region
    $region22: #{tpu_custom_call.1} parent=1 // pred_check
      _
    $region23: #{tpu_custom_call.1} parent=1 // pred_check_branch
      %175 = sbr.rel (0) target = $region25
    $region24: #{tpu_custom_call.1} parent=1 // pred_region
      %s177 = ssub.s32 256, 256
      %178 = vsyncadd [#allocation4], %s177
      %s179 = sshll.u32 [#allocation7], 4
      %s180 = int_to_ptr.vmem [resolvable:$true] %s179
      %185 = dma.vmem_to_hbm [thread:$0]  %s180, 256, %s3, [#allocation4], 64, 64, 4
    $region25: #{tpu_custom_call.1} parent=1 // pred_fallthru
      _
    // Predicated region
    $region26: #{tpu_custom_call.1} parent=1 // pred_check
      _
    $region27: #{tpu_custom_call.1} parent=1 // pred_check_branch
      %187 = sbr.rel (0) target = $region29
    $region28: #{tpu_custom_call.1} parent=1 // pred_region
      %188 = dma.done [#allocation4], 256
    $region29: #{tpu_custom_call.1} parent=1 // pred_fallthru
      _
    %189 = vsyncpa [#allocation3], 1
    %190 = vsyncpa [#allocation6], 1
    %191 = vsyncpa [#allocation4], 1

</llo_original>
